<compile_context>
chip_gen: v5e
topology: v5e:2x2
jax: 0.10.0
libtpu: 0.0.40
codegen_flags: <defaults>
</compile_context>

<pallas_src>
import numpy as np
import jax
import jax.numpy as jnp
from jax.experimental import pallas as pl
from jax.experimental.pallas import tpu as pltpu


def _adaptive_pool_matrix(in_size: int, out_size: int) -> np.ndarray:
    """M of shape (out_size, in_size) s.t. M @ v adaptively average-pools v."""
    M = np.zeros((out_size, in_size), dtype=np.float32)
    for r in range(out_size):
        start = (r * in_size) // out_size
        end = -((-(r + 1) * in_size) // out_size)  # ceil((r+1)*in/out)
        M[r, start:end] = 1.0 / (end - start)
    return M


def _pool_kernel(x_ref, p_ref, o_ref):
    # x_ref: (BNC, H*W)   p_ref: (H*W, OH*OW)   o_ref: (BNC, OH*OW)
    o_ref[...] = jnp.dot(
        x_ref[...], p_ref[...], preferred_element_type=jnp.float32
    ).astype(o_ref.dtype)


_VMEM_BLOCK_BUDGET = 24 * 1024 * 1024   # bytes for 2x-buffered in/out blocks + P
_VMEM_LIMIT = 32 * 1024 * 1024          # <= half of v7x's 64 MiB physical VMEM


def adaptive_avg_pool2d(x: jax.Array, output_size=(5, 5)) -> jax.Array:
    N, C, H, W = x.shape
    OH, OW = output_size
    NC, HW, OHW = N * C, H * W, OH * OW

    # Kronecker pooling matrix: out_vec = P @ x_vec  (P shape (OH*OW, H*W)).
    A = _adaptive_pool_matrix(H, OH)          # (OH, H)  row pooling
    B = _adaptive_pool_matrix(W, OW)          # (OW, W)  col pooling
    P_T = jnp.asarray(np.kron(A, B).T)        # (H*W, OH*OW)

    x2d = x.reshape(NC, HW)                   # free reshape, lane dim = H*W

    # Planes-per-step block, budgeted against VMEM:
    # 2x double-buffered input block + 2x output block + resident P.
    bytes_per_plane = 4 * (HW + OHW)
    p_bytes = 4 * HW * OHW
    max_bnc = max(8, (_VMEM_BLOCK_BUDGET - p_bytes) // (2 * bytes_per_plane))
    max_bnc = (max_bnc // 8) * 8

    if NC <= max_bnc:
        bnc = NC                              # single grid step, no padding
        nc_pad = NC
    else:
        bnc = max_bnc                         # multiple of 8 (sublane aligned)
        nc_pad = ((NC + bnc - 1) // bnc) * bnc
        if nc_pad != NC:
            x2d = jnp.pad(x2d, ((0, nc_pad - NC), (0, 0)))
    grid = (nc_pad // bnc,)

    cost = pl.CostEstimate(
        flops=2 * nc_pad * HW * OHW,
        transcendentals=0,
        bytes_accessed=4 * (nc_pad * (HW + OHW) + HW * OHW),
    )

    out2d = pl.pallas_call(
        _pool_kernel,
        out_shape=jax.ShapeDtypeStruct((nc_pad, OHW), x.dtype),
        grid=grid,
        in_specs=[
            pl.BlockSpec((bnc, HW), lambda i: (i, 0)),
            pl.BlockSpec((HW, OHW), lambda i: (0, 0)),
        ],
        out_specs=pl.BlockSpec((bnc, OHW), lambda i: (i, 0)),
        compiler_params=pltpu.CompilerParams(
            dimension_semantics=("parallel",),
            vmem_limit_bytes=_VMEM_LIMIT,
        ),
        cost_estimate=cost,
    )(x2d, P_T)

    return out2d[:NC].reshape(N, C, OH, OW)


if __name__ == "__main__":
    key = jax.random.PRNGKey(0)

    # Module's shape: [1, 3, 10, 10] -> [1, 3, 5, 5].
    x = jax.random.normal(key, (1, 3, 10, 10), dtype=jnp.float32)
    out = jax.block_until_ready(adaptive_avg_pool2d(x, (5, 5)))
    assert out.shape == (1, 3, 5, 5), out.shape
    # 10 -> 5 divides evenly, so adaptive pooling == 2x2 mean pooling.
    ref = x.reshape(1, 3, 5, 2, 5, 2).mean(axis=(3, 5))
    np.testing.assert_allclose(np.asarray(out), np.asarray(ref), rtol=1e-5, atol=1e-5)

    # Sanity check for ragged adaptive windows (H, W not divisible by 5).
    x2 = jax.random.normal(jax.random.PRNGKey(1), (2, 4, 7, 9), dtype=jnp.float32)
    out2 = jax.block_until_ready(adaptive_avg_pool2d(x2, (5, 5)))
    A2 = _adaptive_pool_matrix(7, 5)
    B2 = _adaptive_pool_matrix(9, 5)
    ref2 = np.einsum("oi,bcij,pj->bcop", A2, np.asarray(x2), B2)
    np.testing.assert_allclose(np.asarray(out2), ref2, rtol=1e-5, atol=1e-5)

    print("KERNEL_OK")
</pallas_src>

<mosaic_0001>
module attributes {stable_mosaic.version = 11 : i64} {
  func.func @_pool_kernel(%arg0: i32, %arg1: memref<3x100xf32, #tpu.memory_space<vmem>>, %arg2: memref<100x25xf32, #tpu.memory_space<vmem>>, %arg3: memref<3x25xf32, #tpu.memory_space<vmem>>) attributes {dimension_semantics = [#tpu.dimension_semantics<parallel>], iteration_bounds = array<i64: 1>, scalar_prefetch = 0 : i64, scratch_operands = 0 : i64, tpu.core_type = #tpu.core_type<tc>, window_params = [{transform_indices = @transform_0, window_bounds = array<i64: 3, 100>}, {pipeline_mode = #tpu.pipeline_mode<synchronous>, transform_indices = @transform_1, window_bounds = array<i64: 100, 25>}, {transform_indices = @transform_2, window_bounds = array<i64: 3, 25>}]} {
    %c0 = arith.constant 0 : index
    %c0_0 = arith.constant 0 : index
    %0 = vector.load %arg1[%c0, %c0_0] : memref<3x100xf32, #tpu.memory_space<vmem>>, vector<3x100xf32>
    %c0_1 = arith.constant 0 : index
    %c0_2 = arith.constant 0 : index
    %1 = vector.load %arg2[%c0_1, %c0_2] : memref<100x25xf32, #tpu.memory_space<vmem>>, vector<100x25xf32>
    %cst = arith.constant dense<0.000000e+00> : vector<3x25xf32>
    %2 = tpu.matmul %0, %1, %cst {dimension_numbers = #tpu.dot_dimension_numbers<[1], [0], [0], [1], [0, 0, 1, 1], [], []>} : vector<3x100xf32>, vector<100x25xf32>, vector<3x25xf32> -> vector<3x25xf32>
    %c0_3 = arith.constant 0 : index
    %c0_4 = arith.constant 0 : index
    %3 = vector.load %arg3[%c0_3, %c0_4] : memref<3x25xf32, #tpu.memory_space<vmem>>, vector<3x25xf32>
    tpu.vector_store %arg3[%c0_3, %c0_4], %2 {strides = array<i32>} : memref<3x25xf32, #tpu.memory_space<vmem>>, vector<3x25xf32>,
    return
  }
  func.func @transform_0(%arg0: i32) -> (i32, i32) {
    %c0_i32 = arith.constant 0 : i32
    %c0_i32_0 = arith.constant 0 : i32
    return %arg0, %c0_i32 : i32, i32
  }
  func.func @transform_1(%arg0: i32) -> (i32, i32) {
    %c0_i32 = arith.constant 0 : i32
    %c0_i32_0 = arith.constant 0 : i32
    %c0_i32_1 = arith.constant 0 : i32
    return %c0_i32, %c0_i32_0 : i32, i32
  }
  func.func @transform_2(%arg0: i32) -> (i32, i32) {
    %c0_i32 = arith.constant 0 : i32
    %c0_i32_0 = arith.constant 0 : i32
    return %arg0, %c0_i32 : i32, i32
  }
}

</mosaic_0001>

<llo_original>
// kernel: tpu_custom_call.1
$region0: #{tpu_custom_call.1}
  #allocation0 [shape = 'u32[]', space=smem, size = 0x4, offset = 0x4, fixed_abs, tag = 'smem constant byte address 0x4 - core index']
  #allocation1 [shape = 'u32[72,128]{1,0:T(1,128)}', space=vmem, size = 0x9000, scoped, tag = 'internal scratch']
  %s0 = inlined_call_operand.vmem [shape: f32[3,100], index: 0, kind: input, shape index: {}]
  %s1 = inlined_call_operand.vmem [shape: f32[100,25], index: 1, kind: input, shape index: {}]
  %s2 = inlined_call_operand.hbm [shape: f32[3,25], index: 2, kind: output, shape index: {}]
  %s3 = sld [smem:[#allocation0]]
  $region18: #{tpu_custom_call.1} parent=0
    _
  %s5 = ssub.s32 1, %s3
  %s6 = scalar_select 0, %s5, %s3
  $region1: #{tpu_custom_call.1} parent=0
    #allocation2 [shape = 'u8[2048]{0}', space=vmem, size = 0x800, scoped, tag = 'output window, operand 0, single buffered']
    #allocation3 [shape = 's32[1]{0}', space=sflag, size = 0x4, scoped, tag = 'scoped memory for tpu_custom_call.1']
    %7 = vsyncpa [#allocation3], 0
    // Predicated region
    $region2: #{tpu_custom_call.1} parent=1 // pred_check
      _
    $region3: #{tpu_custom_call.1} parent=1 // pred_check_branch
      %9 = sbr.rel (0) target = $region5
    $region4: #{tpu_custom_call.1} parent=1 // pred_region
      _
    $region5: #{tpu_custom_call.1} parent=1 // pred_fallthru
      _
    // Predicated region
    $region6: #{tpu_custom_call.1} parent=1 // pred_check
      _
    $region7: #{tpu_custom_call.1} parent=1 // pred_check_branch
      %11 = sbr.rel (0) target = $region9
    $region8: #{tpu_custom_call.1} parent=1 // pred_region
      _
    $region9: #{tpu_custom_call.1} parent=1 // pred_fallthru
      _
    %v12 = vld [vmem:[%s0] sm:$0x7]
    %v13 = vld [vmem:[%s1] sm:$0xff]
    %v14 = vld [vmem:[%s1 + $0x8] sm:$0xff]
    %v15 = vld [vmem:[%s1 + $0x10] sm:$0xff]
    %v16 = vld [vmem:[%s1 + $0x18] sm:$0xff]
    %v17 = vld [vmem:[%s1 + $0x20] sm:$0xff]
    %v18 = vld [vmem:[%s1 + $0x28] sm:$0xff]
    %v19 = vld [vmem:[%s1 + $0x30] sm:$0xff]
    %v20 = vld [vmem:[%s1 + $0x38] sm:$0xff]
    %v21 = vld [vmem:[%s1 + $0x40] sm:$0xff]
    %v22 = vld [vmem:[%s1 + $0x48] sm:$0xff]
    %v23 = vld [vmem:[%s1 + $0x50] sm:$0xff]
    %v24 = vld [vmem:[%s1 + $0x58] sm:$0xff]
    %v25 = vld [vmem:[%s1 + $0x60] sm:$0xf]
    %vm26 = vcmask 818176
    %v28 = vsel %vm26, %v12, 0
    %vm30 = vcmask 1043456
    %v32 = vsel %vm30, %v25, 0
    %34 = vmatpush.msra.mxu0 0.0
    %35 = vmatpush.msra.mxu0 0.0
    %36 = vmatpush.msra.mxu0 0.0
    %37 = vmatpush.msra.mxu0 %v32
    %38 = vmatpush.msra.mxu0 %v24
    %39 = vmatpush.msra.mxu0 %v23
    %40 = vmatpush.msra.mxu0 %v22
    %41 = vmatpush.msra.mxu0 %v21
    %42 = vmatpush.msra.mxu0 %v20
    %43 = vmatpush.msra.mxu0 %v19
    %44 = vmatpush.msra.mxu0 %v18
    %45 = vmatpush.msra.mxu0 %v17
    %46 = vmatpush.msra.mxu0 %v16
    %47 = vmatpush.msra.mxu0 %v15
    %48 = vmatpush.msra.mxu0 %v14
    %49 = vmatpush.msra.mxu0 %v13
    %50 = vmatmul.f32.gmra.mxu0 %v28
    %v51 = vpop.f32.mrf.mxu0
    %v52 = vadd.f32 0.0, %v51
    %53 = vdwg.mxu0
    %vm54 = vcmask 198656
    %55 = vst.msk [vmem:[#allocation2] sm:$0x7] %vm54, %v52
    // Predicated region
    $region10: #{tpu_custom_call.1} parent=1 // pred_check
      _
    $region11: #{tpu_custom_call.1} parent=1 // pred_check_branch
      %57 = sbr.rel (0) target = $region13
    $region12: #{tpu_custom_call.1} parent=1 // pred_region
      %59 = vsyncadd [#allocation3], 0
      %s61 = sshll.u32 [#allocation2], 4
      %s62 = int_to_ptr.vmem [resolvable:$true] %s61
      %s63 = sshll.u32 %s2, 4
      %s64 = int_to_ptr.hbm [resolvable:$true] %s63
      %66 = dma.vmem_to_hbm [thread:$0]  %s62, 64, %s64, [#allocation3]
    $region13: #{tpu_custom_call.1} parent=1 // pred_fallthru
      _
    // Predicated region
    $region14: #{tpu_custom_call.1} parent=1 // pred_check
      _
    $region15: #{tpu_custom_call.1} parent=1 // pred_check_branch
      %68 = sbr.rel (0) target = $region17
    $region16: #{tpu_custom_call.1} parent=1 // pred_region
      %70 = dma.done [#allocation3], 64
    $region17: #{tpu_custom_call.1} parent=1 // pred_fallthru
      _
    %71 = vsyncpa [#allocation3], 1

</llo_original>
